<compile_context>
chip_gen: v7x
topology: tpu7x:2x2x1
jax: 0.10.0
libtpu: 0.0.40
codegen_flags: <defaults>
</compile_context>

<pallas_src>
from itertools import zip_longest

import jax
import jax.numpy as jnp
from jax.experimental import pallas as pl
from jax.experimental.pallas import tpu as pltpu

LANE = 128       # lane width   (last-dim alignment)
SUBLANE = 8      # sublane width (second-to-last dim alignment)
MAX_BATCH_TILE = 512


def _round_up(n, m):
    return ((n + m - 1) // m) * m


def _pad2d(a, rows, cols):
    r, c = a.shape
    return jnp.pad(a, ((0, rows - r), (0, cols - c)))


def _init_linear(key, in_dim, out_dim):
    """Deterministic init mimicking torch.nn.Linear default U(-k, k), k=1/sqrt(in)."""
    k = 1.0 / jnp.sqrt(jnp.asarray(in_dim, jnp.float32))
    kw, kb = jax.random.split(key)
    w = jax.random.uniform(kw, (in_dim, out_dim), jnp.float32, -k, k)
    b = jax.random.uniform(kb, (1, out_dim), jnp.float32, -k, k)
    return w, b


class MlpExtractorPallas:
    """JAX/Pallas re-implementation of stable_baselines3 MlpExtractor
    (activation_fn = nn.Tanh) with a single fused forward kernel."""

    def __init__(self, feature_dim, net_arch, key):
        # ---- parse net_arch exactly like MlpExtractor.__init__ ----------- #
        shared_dims, pi_dims, vf_dims = [], [], []
        policy_only_layers, value_only_layers = [], []
        last_shared = feature_dim
        for layer in net_arch:
            if isinstance(layer, int):
                shared_dims.append((last_shared, layer))
                last_shared = layer
            else:
                assert isinstance(layer, dict)
                if "pi" in layer:
                    policy_only_layers = layer["pi"]
                if "vf" in layer:
                    value_only_layers = layer["vf"]
                break
        last_pi = last_vf = last_shared
        for pi_size, vf_size in zip_longest(policy_only_layers, value_only_layers):
            if pi_size is not None:
                pi_dims.append((last_pi, pi_size))
                last_pi = pi_size
            if vf_size is not None:
                vf_dims.append((last_vf, vf_size))
                last_vf = vf_size

        self.feature_dim = feature_dim
        self.latent_dim_pi = last_pi
        self.latent_dim_vf = last_vf

        # ---- init unpadded params (kept for the pure-JAX reference) ------ #
        def build(dims, key):
            params = []
            for din, dout in dims:
                key, sub = jax.random.split(key)
                params.append(_init_linear(sub, din, dout))
            return params, key

        self.shared_params, key = build(shared_dims, key)
        self.policy_params, key = build(pi_dims, key)
        self.value_params, key = build(vf_dims, key)

        # ---- build lane-dense padded parameters for the fused kernel ----- #
        def pad_params(params):
            out = []
            for w, b in params:
                din_p = _round_up(w.shape[0], LANE)
                dout_p = _round_up(w.shape[1], LANE)
                out.append((_pad2d(w, din_p, dout_p), _pad2d(b, 1, dout_p)))
            return out

        shared_p = pad_params(self.shared_params)
        pi_p = pad_params(self.policy_params)
        vf_p = pad_params(self.value_params)

        # Fuse the first pi / vf layers (same input: shared latent) into one
        # wide matmul by concatenating their weights along the output dim.
        self._use_concat = bool(pi_p) and bool(vf_p)
        flat = []
        for w, b in shared_p:
            flat += [w, b]
        if self._use_concat:
            (wp, bp), (wv, bv) = pi_p[0], vf_p[0]
            self._dpi0_pad = wp.shape[1]
            flat += [jnp.concatenate([wp, wv], axis=1),
                     jnp.concatenate([bp, bv], axis=1)]
            pi_rest, vf_rest = pi_p[1:], vf_p[1:]
        else:
            self._dpi0_pad = 0
            pi_rest, vf_rest = pi_p, vf_p
        for w, b in pi_rest:
            flat += [w, b]
        for w, b in vf_rest:
            flat += [w, b]

        self._flat_params = flat
        self._n_shared = len(shared_p)
        self._n_pi_rest = len(pi_rest)
        self._n_vf_rest = len(vf_rest)
        self._din_pad = _round_up(feature_dim, LANE)
        self._pi_out_pad = _round_up(self.latent_dim_pi, LANE)
        self._vf_out_pad = _round_up(self.latent_dim_vf, LANE)

        # Cost-estimate bookkeeping (per padded batch row).
        self._flops_per_row = 0
        self._trans_per_row = 0
        self._param_bytes = 0
        for i in range(0, len(flat), 2):
            w, b = flat[i], flat[i + 1]
            self._flops_per_row += 2 * w.shape[0] * w.shape[1]
            self._trans_per_row += w.shape[1]
            self._param_bytes += 4 * (w.size + b.size)

        # jit-compiled end-to-end forward (pad -> fused kernel -> slice);
        # retraces (and caches) once per distinct batch shape.
        self._jit_forward = jax.jit(self._forward_impl)

    # ---- fused kernel body (structure is static -> unrolled at trace) ---- #
    def _make_kernel(self):
        n_shared = self._n_shared
        use_concat = self._use_concat
        n_pi = self._n_pi_rest
        n_vf = self._n_vf_rest
        dpi0 = self._dpi0_pad

        def kernel(x_ref, *rest):
            param_refs = rest[:-2]
            pi_ref, vf_ref = rest[-2], rest[-1]

            def layer(h, idx):
                w = param_refs[idx][...]
                b = param_refs[idx + 1][...]
                y = jnp.dot(h, w, preferred_element_type=jnp.float32)  # MXU
                return jnp.tanh(y + b)                                  # VPU + EUP

            idx = 0
            h = x_ref[...]
            for _ in range(n_shared):
                h = layer(h, idx)
                idx += 2
            if use_concat:
                hv = layer(h, idx)          # one wide matmul feeds both heads
                idx += 2
                p = hv[:, :dpi0]            # lane-aligned split (multiple of 128)
                v = hv[:, dpi0:]
            else:
                p, v = h, h
            for _ in range(n_pi):
                p = layer(p, idx)
                idx += 2
            for _ in range(n_vf):
                v = layer(v, idx)
                idx += 2
            pi_ref[...] = p
            vf_ref[...] = v

        return kernel

    # ---- jitted forward implementation ------------------------------------ #
    def _forward_impl(self, features):
        B, din = features.shape
        assert din == self.feature_dim

        # Batch tiling: one block for small B; tiled "parallel" grid for large
        # B so x/out DMAs pipeline and megacore (v7x) shards the batch.
        b_sub = _round_up(max(B, 1), SUBLANE)
        tb = min(b_sub, MAX_BATCH_TILE)
        b_pad = _round_up(b_sub, tb)
        grid = (b_pad // tb,)

        x = _pad2d(features.astype(jnp.float32), b_pad, self._din_pad)

        batch_spec = lambda shape: pl.BlockSpec(shape, lambda i: (i, 0))
        weight_spec = lambda shape: pl.BlockSpec(shape, lambda i: (0, 0))

        in_specs = [batch_spec((tb, self._din_pad))]
        in_specs += [weight_spec(p.shape) for p in self._flat_params]
        out_specs = (batch_spec((tb, self._pi_out_pad)),
                     batch_spec((tb, self._vf_out_pad)))
        out_shape = (
            jax.ShapeDtypeStruct((b_pad, self._pi_out_pad), jnp.float32),
            jax.ShapeDtypeStruct((b_pad, self._vf_out_pad), jnp.float32),
        )

        cost = pl.CostEstimate(
            flops=b_pad * self._flops_per_row,
            transcendentals=b_pad * self._trans_per_row,
            bytes_accessed=4 * (x.size
                                + b_pad * (self._pi_out_pad + self._vf_out_pad))
                           + self._param_bytes,
        )

        pi_pad, vf_pad = pl.pallas_call(
            self._make_kernel(),
            out_shape=out_shape,
            grid=grid,
            in_specs=in_specs,
            out_specs=out_specs,
            compiler_params=pltpu.CompilerParams(
                dimension_semantics=("parallel",)),
            cost_estimate=cost,
        )(x, *self._flat_params)

        return (pi_pad[:B, : self.latent_dim_pi],
                vf_pad[:B, : self.latent_dim_vf])

    # ---- public forward ---------------------------------------------------- #
    def forward(self, features):
        return self._jit_forward(features)

    __call__ = forward


# ------------------------------ pure-JAX reference ------------------------- #

def _reference_forward(model, features):
    def run(x, params):
        for (w, b) in params:
            x = jnp.tanh(x @ w + b)
        return x

    h = run(features, model.shared_params)
    return run(h, model.policy_params), run(h, model.value_params)


# ------------------------------------ main --------------------------------- #

if __name__ == "__main__":
    key = jax.random.PRNGKey(0)
    k_params, k_x = jax.random.split(key)

    batch = 8
    feature_dim = 32
    # net_arch: one shared layer of 64, then pi head [32], vf head [32]
    net_arch = [64, dict(pi=[32], vf=[32])]

    model = MlpExtractorPallas(feature_dim, net_arch, k_params)

    features = jax.random.normal(k_x, (batch, feature_dim), jnp.float32)

    latent_pi, latent_vf = model(features)
    latent_pi = jax.block_until_ready(latent_pi)
    latent_vf = jax.block_until_ready(latent_vf)

    assert latent_pi.shape == (batch, model.latent_dim_pi)
    assert latent_vf.shape == (batch, model.latent_dim_vf)

    ref_pi, ref_vf = _reference_forward(model, features)
    assert jnp.allclose(latent_pi, ref_pi, atol=1e-5, rtol=1e-5)
    assert jnp.allclose(latent_vf, ref_vf, atol=1e-5, rtol=1e-5)

    print("KERNEL_OK")
</pallas_src>

<mosaic_0001>
module attributes {stable_mosaic.version = 11 : i64} {
  func.func @kernel(%arg0: i32, %arg1: memref<8x128xf32, #tpu.memory_space<vmem>>, %arg2: memref<128x128xf32, #tpu.memory_space<vmem>>, %arg3: memref<1x128xf32, #tpu.memory_space<vmem>>, %arg4: memref<128x256xf32, #tpu.memory_space<vmem>>, %arg5: memref<1x256xf32, #tpu.memory_space<vmem>>, %arg6: memref<8x128xf32, #tpu.memory_space<vmem>>, %arg7: memref<8x128xf32, #tpu.memory_space<vmem>>) attributes {dimension_semantics = [#tpu.dimension_semantics<parallel>], iteration_bounds = array<i64: 1>, scalar_prefetch = 0 : i64, scratch_operands = 0 : i64, tpu.core_type = #tpu.core_type<tc>, window_params = [{transform_indices = @transform_0, window_bounds = array<i64: 8, 128>}, {pipeline_mode = #tpu.pipeline_mode<synchronous>, transform_indices = @transform_1, window_bounds = array<i64: 128, 128>}, {pipeline_mode = #tpu.pipeline_mode<synchronous>, transform_indices = @transform_2, window_bounds = array<i64: 1, 128>}, {pipeline_mode = #tpu.pipeline_mode<synchronous>, transform_indices = @transform_3, window_bounds = array<i64: 128, 256>}, {pipeline_mode = #tpu.pipeline_mode<synchronous>, transform_indices = @transform_4, window_bounds = array<i64: 1, 256>}, {transform_indices = @transform_5, window_bounds = array<i64: 8, 128>}, {transform_indices = @transform_6, window_bounds = array<i64: 8, 128>}]} {
    %c0 = arith.constant 0 : index
    %c0_0 = arith.constant 0 : index
    %0 = vector.load %arg1[%c0, %c0_0] : memref<8x128xf32, #tpu.memory_space<vmem>>, vector<8x128xf32>
    %c0_1 = arith.constant 0 : index
    %c0_2 = arith.constant 0 : index
    %1 = vector.load %arg2[%c0_1, %c0_2] : memref<128x128xf32, #tpu.memory_space<vmem>>, vector<128x128xf32>
    %c0_3 = arith.constant 0 : index
    %c0_4 = arith.constant 0 : index
    %2 = vector.load %arg3[%c0_3, %c0_4] : memref<1x128xf32, #tpu.memory_space<vmem>>, vector<1x128xf32>
    %cst = arith.constant dense<0.000000e+00> : vector<8x128xf32>
    %3 = tpu.matmul %0, %1, %cst {dimension_numbers = #tpu.dot_dimension_numbers<[1], [0], [0], [1], [0, 0, 1, 1], [], []>} : vector<8x128xf32>, vector<128x128xf32>, vector<8x128xf32> -> vector<8x128xf32>
    %4 = vector.broadcast %2 : vector<1x128xf32> to vector<8x128xf32>
    %5 = arith.addf %3, %4 : vector<8x128xf32>
    %6 = math.tanh %5 : vector<8x128xf32>
    %c0_5 = arith.constant 0 : index
    %c0_6 = arith.constant 0 : index
    %7 = vector.load %arg4[%c0_5, %c0_6] : memref<128x256xf32, #tpu.memory_space<vmem>>, vector<128x256xf32>
    %c0_7 = arith.constant 0 : index
    %c0_8 = arith.constant 0 : index
    %8 = vector.load %arg5[%c0_7, %c0_8] : memref<1x256xf32, #tpu.memory_space<vmem>>, vector<1x256xf32>
    %cst_9 = arith.constant dense<0.000000e+00> : vector<8x256xf32>
    %9 = tpu.matmul %6, %7, %cst_9 {dimension_numbers = #tpu.dot_dimension_numbers<[1], [0], [0], [1], [0, 0, 1, 1], [], []>} : vector<8x128xf32>, vector<128x256xf32>, vector<8x256xf32> -> vector<8x256xf32>
    %10 = vector.broadcast %8 : vector<1x256xf32> to vector<8x256xf32>
    %11 = arith.addf %9, %10 : vector<8x256xf32>
    %12 = math.tanh %11 : vector<8x256xf32>
    %13 = vector.extract_strided_slice %12 {offsets = [0, 0], sizes = [8, 128], strides = [1, 1]} : vector<8x256xf32> to vector<8x128xf32>
    %14 = vector.extract_strided_slice %12 {offsets = [0, 128], sizes = [8, 128], strides = [1, 1]} : vector<8x256xf32> to vector<8x128xf32>
    %c0_10 = arith.constant 0 : index
    %c0_11 = arith.constant 0 : index
    %15 = vector.load %arg6[%c0_10, %c0_11] : memref<8x128xf32, #tpu.memory_space<vmem>>, vector<8x128xf32>
    tpu.vector_store %arg6[%c0_10, %c0_11], %13 {strides = array<i32>} : memref<8x128xf32, #tpu.memory_space<vmem>>, vector<8x128xf32>,
    %c0_12 = arith.constant 0 : index
    %c0_13 = arith.constant 0 : index
    %16 = vector.load %arg7[%c0_12, %c0_13] : memref<8x128xf32, #tpu.memory_space<vmem>>, vector<8x128xf32>
    tpu.vector_store %arg7[%c0_12, %c0_13], %14 {strides = array<i32>} : memref<8x128xf32, #tpu.memory_space<vmem>>, vector<8x128xf32>,
    return
  }
  func.func @transform_0(%arg0: i32) -> (i32, i32) {
    %c0_i32 = arith.constant 0 : i32
    %c0_i32_0 = arith.constant 0 : i32
    return %arg0, %c0_i32 : i32, i32
  }
  func.func @transform_1(%arg0: i32) -> (i32, i32) {
    %c0_i32 = arith.constant 0 : i32
    %c0_i32_0 = arith.constant 0 : i32
    %c0_i32_1 = arith.constant 0 : i32
    return %c0_i32, %c0_i32_0 : i32, i32
  }
  func.func @transform_2(%arg0: i32) -> (i32, i32) {
    %c0_i32 = arith.constant 0 : i32
    %c0_i32_0 = arith.constant 0 : i32
    %c0_i32_1 = arith.constant 0 : i32
    return %c0_i32, %c0_i32_0 : i32, i32
  }
  func.func @transform_3(%arg0: i32) -> (i32, i32) {
    %c0_i32 = arith.constant 0 : i32
    %c0_i32_0 = arith.constant 0 : i32
    %c0_i32_1 = arith.constant 0 : i32
    return %c0_i32, %c0_i32_0 : i32, i32
  }
  func.func @transform_4(%arg0: i32) -> (i32, i32) {
    %c0_i32 = arith.constant 0 : i32
    %c0_i32_0 = arith.constant 0 : i32
    %c0_i32_1 = arith.constant 0 : i32
    return %c0_i32, %c0_i32_0 : i32, i32
  }
  func.func @transform_5(%arg0: i32) -> (i32, i32) {
    %c0_i32 = arith.constant 0 : i32
    %c0_i32_0 = arith.constant 0 : i32
    return %arg0, %c0_i32 : i32, i32
  }
  func.func @transform_6(%arg0: i32) -> (i32, i32) {
    %c0_i32 = arith.constant 0 : i32
    %c0_i32_0 = arith.constant 0 : i32
    return %arg0, %c0_i32 : i32, i32
  }
}

</mosaic_0001>

<llo_original>
// kernel: _forward_impl.1
$region0: #{_forward_impl.1}
  #allocation0 [shape = 'u32[]', space=smem, size = 0x4, offset = 0x4, fixed_abs, tag = 'smem constant byte address 0x4 - core index']
  #allocation1 [shape = 'u32[144,128]{1,0:T(1,128)}', space=vmem, size = 0x12000, scoped, tag = 'internal scratch']
  %s0 = inlined_call_operand.vmem [shape: f32[8,128], index: 0, kind: input, shape index: {}]
  %s1 = inlined_call_operand.hbm [shape: f32[128,128], index: 1, kind: input, shape index: {}]
  %s2 = inlined_call_operand.vmem [shape: f32[1,128], index: 2, kind: input, shape index: {}]
  %s3 = inlined_call_operand.hbm [shape: f32[128,256], index: 3, kind: input, shape index: {}]
  %s4 = inlined_call_operand.vmem [shape: f32[1,256], index: 4, kind: input, shape index: {}]
  %s5 = inlined_call_operand.hbm [shape: f32[8,128], index: 5, kind: output, shape index: {0}]
  %s6 = inlined_call_operand.hbm [shape: f32[8,128], index: 6, kind: output, shape index: {1}]
  %7 = xla_tuple %s5, %s6
  %s8 = sld [smem:[#allocation0]]
  $region46: #{_forward_impl.1} parent=0
    _
  %s10 = ssub.s32 1, %s8
  %s11 = scalar_select 0, %s10, %s8
  $region1: #{_forward_impl.1} parent=0
    #allocation2 [shape = 'u8[65536]{0}', space=vmem, size = 0x10000, scoped, tag = 'input window, operand 1, single buffered']
    #allocation3 [shape = 's32[1]{0}', space=sflag, size = 0x4, scoped, tag = 'scoped memory for _forward_impl.1']
    #allocation4 [shape = 's32[1]{0}', space=sflag, size = 0x4, scoped, tag = 'scoped memory for _forward_impl.1']
    #allocation5 [shape = 'u8[131072]{0}', space=vmem, size = 0x20000, scoped, tag = 'input window, operand 3, single buffered']
    #allocation6 [shape = 's32[1]{0}', space=sflag, size = 0x4, scoped, tag = 'scoped memory for _forward_impl.1']
    #allocation7 [shape = 'u8[4096]{0}', space=vmem, size = 0x1000, scoped, tag = 'output window, operand 0, single buffered']
    #allocation8 [shape = 'u8[4096]{0}', space=vmem, size = 0x1000, scoped, tag = 'output window, operand 1, single buffered']
    #allocation9 [shape = 's32[1]{0}', space=sflag, size = 0x4, scoped, tag = 'scoped memory for _forward_impl.1']
    %12 = vsyncpa [#allocation3], 0
    %13 = vsyncpa [#allocation6], 0
    %14 = vsyncpa [#allocation4], 0
    %15 = vsyncpa [#allocation9], 0
    // Predicated region
    $region2: #{_forward_impl.1} parent=1 // pred_check
      _
    $region3: #{_forward_impl.1} parent=1 // pred_check_branch
      %17 = sbr.rel (0) target = $region5
    $region4: #{_forward_impl.1} parent=1 // pred_region
      _
    $region5: #{_forward_impl.1} parent=1 // pred_fallthru
      _
    // Predicated region
    $region6: #{_forward_impl.1} parent=1 // pred_check
      _
    $region7: #{_forward_impl.1} parent=1 // pred_check_branch
      %19 = sbr.rel (0) target = $region9
    $region8: #{_forward_impl.1} parent=1 // pred_region
      %s21 = ssub.s32 2048, 2048
      %22 = vsyncadd [#allocation3], %s21
      %s23 = sshll.u32 [#allocation2], 4
      %s24 = int_to_ptr.vmem [resolvable:$true] %s23
      %29 = dma.hbm_to_vmem [thread:$0]  %s1, 2048, %s24, [#allocation3], 128, 128, 8
    $region9: #{_forward_impl.1} parent=1 // pred_fallthru
      _
    // Predicated region
    $region10: #{_forward_impl.1} parent=1 // pred_check
      _
    $region11: #{_forward_impl.1} parent=1 // pred_check_branch
      %31 = sbr.rel (0) target = $region13
    $region12: #{_forward_impl.1} parent=1 // pred_region
      _
    $region13: #{_forward_impl.1} parent=1 // pred_fallthru
      _
    // Predicated region
    $region14: #{_forward_impl.1} parent=1 // pred_check
      _
    $region15: #{_forward_impl.1} parent=1 // pred_check_branch
      %33 = sbr.rel (0) target = $region17
    $region16: #{_forward_impl.1} parent=1 // pred_region
      %s35 = ssub.s32 4096, 4096
      %36 = vsyncadd [#allocation6], %s35
      %s37 = sshll.u32 [#allocation5], 4
      %s38 = int_to_ptr.vmem [resolvable:$true] %s37
      %43 = dma.hbm_to_vmem [thread:$0]  %s3, 4096, %s38, [#allocation6], 256, 256, 16
    $region17: #{_forward_impl.1} parent=1 // pred_fallthru
      _
    // Predicated region
    $region18: #{_forward_impl.1} parent=1 // pred_check
      _
    $region19: #{_forward_impl.1} parent=1 // pred_check_branch
      %45 = sbr.rel (0) target = $region21
    $region20: #{_forward_impl.1} parent=1 // pred_region
      _
    $region21: #{_forward_impl.1} parent=1 // pred_fallthru
      _
    // Predicated region
    $region22: #{_forward_impl.1} parent=1 // pred_check
      _
    $region23: #{_forward_impl.1} parent=1 // pred_check_branch
      %47 = sbr.rel (0) target = $region25
    $region24: #{_forward_impl.1} parent=1 // pred_region
      %48 = dma.done [#allocation3], 2048
    $region25: #{_forward_impl.1} parent=1 // pred_fallthru
      _
    // Predicated region
    $region26: #{_forward_impl.1} parent=1 // pred_check
      _
    $region27: #{_forward_impl.1} parent=1 // pred_check_branch
      %50 = sbr.rel (0) target = $region29
    $region28: #{_forward_impl.1} parent=1 // pred_region
      %51 = dma.done [#allocation6], 4096
    $region29: #{_forward_impl.1} parent=1 // pred_fallthru
      _
    %v52 = vld [vmem:[%s0] sm:$0xff]
    %v53 = vld [vmem:[#allocation2] sm:$0xff]
    %v54 = vld [vmem:[#allocation2 + $0x8] sm:$0xff]
    %v55 = vld [vmem:[#allocation2 + $0x10] sm:$0xff]
    %v56 = vld [vmem:[#allocation2 + $0x18] sm:$0xff]
    %v57 = vld [vmem:[#allocation2 + $0x20] sm:$0xff]
    %v58 = vld [vmem:[#allocation2 + $0x28] sm:$0xff]
    %v59 = vld [vmem:[#allocation2 + $0x30] sm:$0xff]
    %v60 = vld [vmem:[#allocation2 + $0x38] sm:$0xff]
    %v61 = vld [vmem:[#allocation2 + $0x40] sm:$0xff]
    %v62 = vld [vmem:[#allocation2 + $0x48] sm:$0xff]
    %v63 = vld [vmem:[#allocation2 + $0x50] sm:$0xff]
    %v64 = vld [vmem:[#allocation2 + $0x58] sm:$0xff]
    %v65 = vld [vmem:[#allocation2 + $0x60] sm:$0xff]
    %v66 = vld [vmem:[#allocation2 + $0x68] sm:$0xff]
    %v67 = vld [vmem:[#allocation2 + $0x70] sm:$0xff]
    %v68 = vld [vmem:[#allocation2 + $0x78] sm:$0xff]
    %v69 = vld [vmem:[%s2] sm:$0x1]
    %v71 = vlaneseq
    %v72 = vshrl.u32 %v71, 7
    %v73 = vsub.s32 0, %v72
    %v74 = vrot.slane %v69, %v73
    %76 = vmatprep.subr.mxu0 0.0
    %77 = vmatpush1.msra.mxu0 %v53
    %78 = vmatprep.subr.mxu0 0.0
    %79 = vmatpush1.msra.mxu0 %v54
    %80 = vmatprep.subr.mxu0 0.0
    %81 = vmatpush1.msra.mxu0 %v55
    %82 = vmatprep.subr.mxu0 0.0
    %83 = vmatpush1.msra.mxu0 %v56
    %84 = vmatprep.subr.mxu0 0.0
    %85 = vmatpush1.msra.mxu0 %v57
    %86 = vmatprep.subr.mxu0 0.0
    %87 = vmatpush1.msra.mxu0 %v58
    %88 = vmatprep.subr.mxu0 0.0
    %89 = vmatpush1.msra.mxu0 %v59
    %90 = vmatprep.subr.mxu0 0.0
    %91 = vmatpush1.msra.mxu0 %v60
    %92 = vmatprep.subr.mxu0 0.0
    %93 = vmatpush1.msra.mxu0 %v61
    %94 = vmatprep.subr.mxu0 0.0
    %95 = vmatpush1.msra.mxu0 %v62
    %96 = vmatprep.subr.mxu0 0.0
    %97 = vmatpush1.msra.mxu0 %v63
    %98 = vmatprep.subr.mxu0 0.0
    %99 = vmatpush1.msra.mxu0 %v64
    %100 = vmatprep.subr.mxu0 0.0
    %101 = vmatpush1.msra.mxu0 %v65
    %102 = vmatprep.subr.mxu0 0.0
    %103 = vmatpush1.msra.mxu0 %v66
    %104 = vmatprep.subr.mxu0 0.0
    %105 = vmatpush1.msra.mxu0 %v67
    %106 = vmatprep.subr.mxu0 0.0
    %107 = vmatpush1.msra.mxu0 %v68
    %108 = vmatprep.subr.mxu0 0.0
    %109 = vmatpush1.msra.mxu0 0.0
    %110 = vmatprep.subr.mxu0 0.0
    %111 = vmatpush1.msra.mxu0 0.0
    %112 = vmatprep.subr.mxu0 0.0
    %113 = vmatpush1.msra.mxu0 0.0
    %114 = vmatprep.subr.mxu0 0.0
    %115 = vmatpush1.msra.mxu0 0.0
    %116 = vmatprep.subr.mxu0 0.0
    %117 = vmatpush1.msra.mxu0 0.0
    %118 = vmatprep.subr.mxu0 0.0
    %119 = vmatpush1.msra.mxu0 0.0
    %120 = vmatprep.subr.mxu0 0.0
    %121 = vmatpush1.msra.mxu0 0.0
    %122 = vmatprep.subr.mxu0 0.0
    %123 = vmatpush1.msra.mxu0 0.0
    %124 = vmatprep.subr.mxu0 0.0
    %125 = vmatpush1.msra.mxu0 0.0
    %126 = vmatprep.subr.mxu0 0.0
    %127 = vmatpush1.msra.mxu0 0.0
    %128 = vmatprep.subr.mxu0 0.0
    %129 = vmatpush1.msra.mxu0 0.0
    %130 = vmatprep.subr.mxu0 0.0
    %131 = vmatpush1.msra.mxu0 0.0
    %132 = vmatprep.subr.mxu0 0.0
    %133 = vmatpush1.msra.mxu0 0.0
    %134 = vmatprep.subr.mxu0 0.0
    %135 = vmatpush1.msra.mxu0 0.0
    %136 = vmatprep.subr.mxu0 0.0
    %137 = vmatpush1.msra.mxu0 0.0
    %138 = vmatprep.subr.mxu0 0.0
    %139 = vmatpush1.msra.mxu0 0.0
    %140 = vmatprep.mubr.f32.mxu0 0.0
    %141 = vmatmul.mubr.f32.gmra.mrb[0].mxu0 %v52
    %v142 = vpop.f32.mrb[0].mxu0
    %v143 = vadd.f32 %v74, %v142
    %v144 = vpop.f32.mrb[0].mxu0
    %145 = vdwg.mxu0
    %v146 = vtanh.pop %v143
    %v147 = vld [vmem:[#allocation5] sm:$0xff]
    %v148 = vld [vmem:[#allocation5 + $0x8] sm:$0xff]
    %v149 = vld [vmem:[#allocation5 + $0x10] sm:$0xff]
    %v150 = vld [vmem:[#allocation5 + $0x18] sm:$0xff]
    %v151 = vld [vmem:[#allocation5 + $0x20] sm:$0xff]
    %v152 = vld [vmem:[#allocation5 + $0x28] sm:$0xff]
    %v153 = vld [vmem:[#allocation5 + $0x30] sm:$0xff]
    %v154 = vld [vmem:[#allocation5 + $0x38] sm:$0xff]
    %v155 = vld [vmem:[#allocation5 + $0x40] sm:$0xff]
    %v156 = vld [vmem:[#allocation5 + $0x48] sm:$0xff]
    %v157 = vld [vmem:[#allocation5 + $0x50] sm:$0xff]
    %v158 = vld [vmem:[#allocation5 + $0x58] sm:$0xff]
    %v159 = vld [vmem:[#allocation5 + $0x60] sm:$0xff]
    %v160 = vld [vmem:[#allocation5 + $0x68] sm:$0xff]
    %v161 = vld [vmem:[#allocation5 + $0x70] sm:$0xff]
    %v162 = vld [vmem:[#allocation5 + $0x78] sm:$0xff]
    %v163 = vld [vmem:[#allocation5 + $0x80] sm:$0xff]
    %v164 = vld [vmem:[#allocation5 + $0x88] sm:$0xff]
    %v165 = vld [vmem:[#allocation5 + $0x90] sm:$0xff]
    %v166 = vld [vmem:[#allocation5 + $0x98] sm:$0xff]
    %v167 = vld [vmem:[#allocation5 + $0xa0] sm:$0xff]
    %v168 = vld [vmem:[#allocation5 + $0xa8] sm:$0xff]
    %v169 = vld [vmem:[#allocation5 + $0xb0] sm:$0xff]
    %v170 = vld [vmem:[#allocation5 + $0xb8] sm:$0xff]
    %v171 = vld [vmem:[#allocation5 + $0xc0] sm:$0xff]
    %v172 = vld [vmem:[#allocation5 + $0xc8] sm:$0xff]
    %v173 = vld [vmem:[#allocation5 + $0xd0] sm:$0xff]
    %v174 = vld [vmem:[#allocation5 + $0xd8] sm:$0xff]
    %v175 = vld [vmem:[#allocation5 + $0xe0] sm:$0xff]
    %v176 = vld [vmem:[#allocation5 + $0xe8] sm:$0xff]
    %v177 = vld [vmem:[#allocation5 + $0xf0] sm:$0xff]
    %v178 = vld [vmem:[#allocation5 + $0xf8] sm:$0xff]
    %v179 = vld [vmem:[%s4] sm:$0x3]
    %v181 = vlaneseq
    %v182 = vshrl.u32 %v181, 7
    %v183 = vsub.s32 0, %v182
    %v184 = vrot.slane %v179, %v183
    %v185 = vlaneseq
    %v186 = vshrl.u32 %v185, 7
    %v187 = vsub.s32 1, %v186
    %v188 = vrot.slane %v179, %v187
    %191 = vmatprep.subr.mxu0 %v148
    %192 = vmatpush1.msra.mxu0 %v147
    %193 = vmatprep.subr.mxu0 %v150
    %194 = vmatpush1.msra.mxu0 %v149
    %195 = vmatprep.subr.mxu0 %v152
    %196 = vmatpush1.msra.mxu0 %v151
    %197 = vmatprep.subr.mxu0 %v154
    %198 = vmatpush1.msra.mxu0 %v153
    %199 = vmatprep.subr.mxu0 %v156
    %200 = vmatpush1.msra.mxu0 %v155
    %201 = vmatprep.subr.mxu0 %v158
    %202 = vmatpush1.msra.mxu0 %v157
    %203 = vmatprep.subr.mxu0 %v160
    %204 = vmatpush1.msra.mxu0 %v159
    %205 = vmatprep.subr.mxu0 %v162
    %206 = vmatpush1.msra.mxu0 %v161
    %207 = vmatprep.subr.mxu0 %v164
    %208 = vmatpush1.msra.mxu0 %v163
    %209 = vmatprep.subr.mxu0 %v166
    %210 = vmatpush1.msra.mxu0 %v165
    %211 = vmatprep.subr.mxu0 %v168
    %212 = vmatpush1.msra.mxu0 %v167
    %213 = vmatprep.subr.mxu0 %v170
    %214 = vmatpush1.msra.mxu0 %v169
    %215 = vmatprep.subr.mxu0 %v172
    %216 = vmatpush1.msra.mxu0 %v171
    %217 = vmatprep.subr.mxu0 %v174
    %218 = vmatpush1.msra.mxu0 %v173
    %219 = vmatprep.subr.mxu0 %v176
    %220 = vmatpush1.msra.mxu0 %v175
    %221 = vmatprep.subr.mxu0 %v178
    %222 = vmatpush1.msra.mxu0 %v177
    %223 = vmatprep.subr.mxu0 0.0
    %224 = vmatpush1.msra.mxu0 0.0
    %225 = vmatprep.subr.mxu0 0.0
    %226 = vmatpush1.msra.mxu0 0.0
    %227 = vmatprep.subr.mxu0 0.0
    %228 = vmatpush1.msra.mxu0 0.0
    %229 = vmatprep.subr.mxu0 0.0
    %230 = vmatpush1.msra.mxu0 0.0
    %231 = vmatprep.subr.mxu0 0.0
    %232 = vmatpush1.msra.mxu0 0.0
    %233 = vmatprep.subr.mxu0 0.0
    %234 = vmatpush1.msra.mxu0 0.0
    %235 = vmatprep.subr.mxu0 0.0
    %236 = vmatpush1.msra.mxu0 0.0
    %237 = vmatprep.subr.mxu0 0.0
    %238 = vmatpush1.msra.mxu0 0.0
    %239 = vmatprep.subr.mxu0 0.0
    %240 = vmatpush1.msra.mxu0 0.0
    %241 = vmatprep.subr.mxu0 0.0
    %242 = vmatpush1.msra.mxu0 0.0
    %243 = vmatprep.subr.mxu0 0.0
    %244 = vmatpush1.msra.mxu0 0.0
    %245 = vmatprep.subr.mxu0 0.0
    %246 = vmatpush1.msra.mxu0 0.0
    %247 = vmatprep.subr.mxu0 0.0
    %248 = vmatpush1.msra.mxu0 0.0
    %249 = vmatprep.subr.mxu0 0.0
    %250 = vmatpush1.msra.mxu0 0.0
    %251 = vmatprep.subr.mxu0 0.0
    %252 = vmatpush1.msra.mxu0 0.0
    %253 = vmatprep.subr.mxu0 0.0
    %254 = vmatpush1.msra.mxu0 0.0
    %255 = vmatprep.mubr.f32.mxu0 0.0
    %256 = vmatmul.mubr.f32.gmra.mrb[0].mxu0 %v146
    %v257 = vpop.f32.mrb[0].mxu0
    %v258 = vadd.f32 %v184, %v257
    %v259 = vpop.f32.mrb[0].mxu0
    %v260 = vadd.f32 %v188, %v259
    %261 = vdwg.mxu0
    %v262 = vtanh.pop %v258
    %v263 = vtanh.pop %v260
    %264 = vst [vmem:[#allocation7] sm:$0xff] %v262
    %265 = vst [vmem:[#allocation8] sm:$0xff] %v263
    // Predicated region
    $region30: #{_forward_impl.1} parent=1 // pred_check
      _
    $region31: #{_forward_impl.1} parent=1 // pred_check_branch
      %267 = sbr.rel (0) target = $region33
    $region32: #{_forward_impl.1} parent=1 // pred_region
      %s269 = ssub.s32 128, 128
      %270 = vsyncadd [#allocation4], %s269
      %s272 = sshll.u32 [#allocation7], 4
      %s273 = int_to_ptr.vmem [resolvable:$true] %s272
      %275 = dma.vmem_to_hbm [thread:$0]  %s273, 128, %s5, [#allocation4]
    $region33: #{_forward_impl.1} parent=1 // pred_fallthru
      _
    // Predicated region
    $region34: #{_forward_impl.1} parent=1 // pred_check
      _
    $region35: #{_forward_impl.1} parent=1 // pred_check_branch
      %277 = sbr.rel (0) target = $region37
    $region36: #{_forward_impl.1} parent=1 // pred_region
      %s279 = ssub.s32 128, 128
      %280 = vsyncadd [#allocation9], %s279
      %s282 = sshll.u32 [#allocation8], 4
      %s283 = int_to_ptr.vmem [resolvable:$true] %s282
      %285 = dma.vmem_to_hbm [thread:$0]  %s283, 128, %s6, [#allocation9]
    $region37: #{_forward_impl.1} parent=1 // pred_fallthru
      _
    // Predicated region
    $region38: #{_forward_impl.1} parent=1 // pred_check
      _
    $region39: #{_forward_impl.1} parent=1 // pred_check_branch
      %287 = sbr.rel (0) target = $region41
    $region40: #{_forward_impl.1} parent=1 // pred_region
      %288 = dma.done [#allocation4], 128
    $region41: #{_forward_impl.1} parent=1 // pred_fallthru
      _
    // Predicated region
    $region42: #{_forward_impl.1} parent=1 // pred_check
      _
    $region43: #{_forward_impl.1} parent=1 // pred_check_branch
      %290 = sbr.rel (0) target = $region45
    $region44: #{_forward_impl.1} parent=1 // pred_region
      %291 = dma.done [#allocation9], 128
    $region45: #{_forward_impl.1} parent=1 // pred_fallthru
      _
    %292 = vsyncpa [#allocation3], 1
    %293 = vsyncpa [#allocation6], 1
    %294 = vsyncpa [#allocation4], 1
    %295 = vsyncpa [#allocation9], 1

</llo_original>
